<compile_context>
chip_gen: v5e
topology: v5e:2x2
jax: 0.10.0
libtpu: 0.0.40
codegen_flags: <defaults>
</compile_context>

<pallas_src>
import functools

import jax
import jax.numpy as jnp
from jax import lax
from jax.experimental import pallas as pl
from jax.experimental.pallas import tpu as pltpu


def _lcd_kernel(x_ref, out_ref, *, cm1, H, W, Ws, n_sweeps, max_checks):
    """Per-batch LCD computation on the lane-stacked class plane.

    x_ref   : (1, Hp, Wp) float32 raw prediction values; class k occupies lanes
              [k*Ws, k*Ws+W), lane k*Ws+W is a zero guard, remaining lanes and
              rows >= H are zero padding.
    out_ref : (1, 2, 128)  row 0 = label-count term, row 1 = label-distance term
    """
    f32 = jnp.float32
    bf16 = jnp.bfloat16
    Hp, Wp = x_ref.shape[1], x_ref.shape[2]

    # in-kernel binarization (padding is 0 -> stays background)
    g = (x_ref[0] > 0).astype(f32)                            # (Hp, Wp)

    # ---- constant planes from iotas (no DMA, no constant VMEM buffers) ------
    r = lax.broadcasted_iota(jnp.int32, (Hp, Wp), 0)
    c = lax.broadcasted_iota(jnp.int32, (Hp, Wp), 1)
    idxp1 = (r * Wp + c + 1).astype(f32)                      # unique pixel id

    # interior of the per-class valid 3x3 conv: rows 1..H-2, local cols 1..W-2
    in_cols = c < 0                                           # all-False
    for k in range(cm1):
        in_cols = jnp.logical_or(
            in_cols, jnp.logical_and(c >= k * Ws + 1, c <= k * Ws + (W - 2)))
    intr = jnp.logical_and(jnp.logical_and(r >= 1, r <= H - 2),
                           in_cols).astype(f32)

    def roll(v, shift, axis):
        # only non-negative static shifts (size-1 == roll by -1)
        return pltpu.roll(v, shift, axis)

    # -------------------- label-distance term --------------------------------
    # 3x3 box sum via rolls; wrap-around lands on zero guards / pads and is
    # excluded by the interior mask anyway.
    s1 = g + roll(g, 1, 1) + roll(g, Wp - 1, 1)               # horizontal 3-sum
    s2 = s1 + roll(s1, 1, 0) + roll(s1, Hp - 1, 0)            # + vertical 3-sum
    conv = s2 * intr                                          # exact valid conv

    # class-sum selector A[k*Ws + w, w] = 1 (0/1 -> exact in bf16)
    jj = lax.broadcasted_iota(jnp.int32, (Wp, W), 0)
    ww = lax.broadcasted_iota(jnp.int32, (Wp, W), 1)
    a_sel = jj < 0
    for k in range(cm1):
        a_sel = jnp.logical_or(a_sel, jj == k * Ws + ww)
    A = a_sel.astype(bf16)

    conv_bf = conv.astype(bf16)                               # values <= 9: exact
    nnz_bf = (conv > 0).astype(bf16)
    csum = jnp.dot(conv_bf, A, preferred_element_type=f32)    # (Hp, W) sum over classes
    nnz = jnp.dot(nnz_bf, A, preferred_element_type=f32)      # (Hp, W) #classes w/ conv!=0
    # sum_k (conv_k - csum)*(conv_k != 0)  ==  sum(conv) - sum(csum * nnz)
    ld = jnp.sum(conv) - jnp.sum(csum * nnz)

    # -------------------- label-count term ------------------------------------
    # per-class 4-connected components by max-label propagation; zero guard
    # lanes / pad rows stop leakage between classes and across roll wrap-around.
    lab0 = idxp1 * g

    def sweep(lab):
        v = jnp.maximum(roll(lab, 1, 0), roll(lab, Hp - 1, 0))
        lab = jnp.maximum(lab, v) * g                         # vertical pair
        h = jnp.maximum(roll(lab, 1, 1), roll(lab, Wp - 1, 1))
        return jnp.maximum(lab, h) * g                        # horizontal pair

    def cond(carry):
        _, delta, it = carry
        return jnp.logical_and(delta > 0.0, it < max_checks)

    def body(carry):
        lab, _, it = carry
        prev = lab
        for _ in range(n_sweeps):                             # unrolled block
            lab = sweep(lab)
        # labels are monotone non-decreasing -> delta == 0 iff converged
        return lab, jnp.max(lab - prev), it + 1

    lab, _, _ = lax.while_loop(cond, body,
                               (lab0, jnp.float32(1.0), jnp.int32(0)))

    # exactly one pixel per component keeps its own id
    roots = (lab == idxp1).astype(bf16)                       # (Hp, Wp) 0/1

    # per-class root totals via a skinny bf16 selector matmul
    jb = lax.broadcasted_iota(jnp.int32, (Wp, cm1), 0)
    kb = lax.broadcasted_iota(jnp.int32, (Wp, cm1), 1)
    band = jnp.logical_and(jb >= kb * Ws, jb < kb * Ws + W).astype(bf16)
    per_row = jnp.dot(roots, band, preferred_element_type=f32)  # (Hp, cm1)
    counts = jnp.sum(per_row, axis=0, keepdims=True)            # (1, cm1)
    lc = jnp.sum(jnp.where(counts > 1.0, 1.0, 0.0))

    # -------------------- merged scalar output --------------------------------
    row = lax.broadcasted_iota(jnp.int32, (2, 128), 0)
    out_ref[0] = jnp.where(row == 0, lc, ld).astype(f32)


def lcd_loss(x, y=None, *, batch_lcd=True, nonlin=True, sweeps_per_check=8):
    """JAX/Pallas equivalent of LCDloss.forward (2D inputs). `y` is unused,
    exactly as in the reference implementation."""
    B, C, H, W = x.shape
    assert C >= 2 and H >= 3 and W >= 3, "need >=2 classes and >=3 spatial extent"
    cm1 = C - 1
    Ws = W + 1                                     # band stride: W cols + 1 guard
    Wt = cm1 * Ws
    Wp = max(128, ((Wt + 127) // 128) * 128)       # lane-dense (multiple of 128)
    Hp = ((H + 1 + 7) // 8) * 8                    # >= H+1: zero row kills row wrap
    assert Hp * Wp + 1 < 2 ** 24, "pixel labels must stay exact in float32"

    # lane-stack the foreground classes: plane[h, k*(W+1)+w] = x[b, k+1, h, w]
    xs = x[:, 1:].astype(jnp.float32)                         # (B, cm1, H, W)
    xs = jnp.transpose(xs, (0, 2, 1, 3))                      # (B, H, cm1, W)
    xs = jnp.pad(xs, ((0, 0), (0, 0), (0, 0), (0, 1)))        # guard lane per band
    xs = xs.reshape(B, H, Wt)
    xs = jnp.pad(xs, ((0, 0), (0, Hp - H), (0, Wp - Wt)))     # (B, Hp, Wp)

    n_sweeps = int(sweeps_per_check)
    max_checks = -(-(H * W) // n_sweeps)           # hard cap == worst-case bound

    kernel = functools.partial(_lcd_kernel, cm1=cm1, H=H, W=W, Ws=Ws,
                               n_sweeps=n_sweeps, max_checks=max_checks)

    # footprint: double-buffered (1,Hp,Wp) input block + small outputs + temps
    vmem_bytes = int(min(96 * 2 ** 20, max(8 * 2 ** 20, 24 * Hp * Wp * 4)))
    est_sweeps = 2 * (H + W)                       # advisory only
    cost = pl.CostEstimate(
        flops=int(B * (est_sweeps * 12 * Hp * Wp + 8 * Hp * Wp * W)),
        transcendentals=0,
        bytes_accessed=int(xs.size * 4 + B * 2 * 128 * 4))

    out = pl.pallas_call(
        kernel,
        out_shape=jax.ShapeDtypeStruct((B, 2, 128), jnp.float32),
        grid=(B,),
        in_specs=[pl.BlockSpec((1, Hp, Wp), lambda b: (b, 0, 0))],
        out_specs=pl.BlockSpec((1, 2, 128), lambda b: (b, 0, 0)),
        compiler_params=pltpu.CompilerParams(
            dimension_semantics=("parallel",),
            vmem_limit_bytes=vmem_bytes),
        cost_estimate=cost,
    )(xs)

    lc_loss = jnp.sum(out[:, 0, 0])
    ld_loss = jnp.sum(out[:, 1, 0])

    lcd = lc_loss * 100.0 - ld_loss / 10.0
    if nonlin:
        # torch: log(lcd) if lcd != 0 else 0 (log of negative -> nan, as in torch)
        lcd = jnp.where(lcd != 0.0, jnp.log(lcd), jnp.float32(0.0))
    if batch_lcd:
        lcd = lcd / B
    return lcd


if __name__ == "__main__":
    key = jax.random.PRNGKey(0)
    kx, ky = jax.random.split(key)
    B, C, H, W = 2, 4, 16, 16
    x = jax.random.normal(kx, (B, C, H, W), dtype=jnp.float32)
    # ground truth is accepted but never used by the loss (matches the reference)
    y = jax.random.randint(ky, (B, 1, H, W), 0, C)

    out = lcd_loss(x, y)
    jax.block_until_ready(out)
    print("KERNEL_OK")
</pallas_src>

<mosaic_0001>
module attributes {stable_mosaic.version = 11 : i64} {
  func.func @_lcd_kernel(%arg0: i32, %arg1: memref<1x24x128xf32, #tpu.memory_space<vmem>>, %arg2: memref<1x2x128xf32, #tpu.memory_space<vmem>>) attributes {dimension_semantics = [#tpu.dimension_semantics<parallel>], iteration_bounds = array<i64: 2>, scalar_prefetch = 0 : i64, scratch_operands = 0 : i64, tpu.core_type = #tpu.core_type<tc>, window_params = [{transform_indices = @transform_0, window_bounds = array<i64: 1, 24, 128>}, {transform_indices = @transform_1, window_bounds = array<i64: 1, 2, 128>}]} {
    %c0 = arith.constant 0 : index
    %c0_0 = arith.constant 0 : index
    %c0_1 = arith.constant 0 : index
    %0 = vector.load %arg1[%c0, %c0_0, %c0_1] : memref<1x24x128xf32, #tpu.memory_space<vmem>>, vector<1x24x128xf32>
    %1 = vector.shape_cast %0 : vector<1x24x128xf32> to vector<24x128xf32>
    %cst = arith.constant 0.000000e+00 : f32
    %2 = vector.broadcast %cst : f32 to vector<24x128xf32>
    %3 = arith.cmpf ogt, %1, %2 : vector<24x128xf32>
    %4 = arith.extui %3 : vector<24x128xi1> to vector<24x128xi32>
    %5 = arith.sitofp %4 : vector<24x128xi32> to vector<24x128xf32>
    %6 = tpu.iota {dimensions = array<i32: 0>} : vector<24x128xi32>
    %7 = tpu.iota {dimensions = array<i32: 1>} : vector<24x128xi32>
    %c128_i32 = arith.constant 128 : i32
    %8 = vector.broadcast %c128_i32 : i32 to vector<24x128xi32>
    %9 = arith.muli %6, %8 : vector<24x128xi32>
    %10 = arith.addi %9, %7 : vector<24x128xi32>
    %c1_i32 = arith.constant 1 : i32
    %11 = vector.broadcast %c1_i32 : i32 to vector<24x128xi32>
    %12 = arith.addi %10, %11 : vector<24x128xi32>
    %13 = arith.sitofp %12 : vector<24x128xi32> to vector<24x128xf32>
    %c0_i32 = arith.constant 0 : i32
    %14 = vector.broadcast %c0_i32 : i32 to vector<24x128xi32>
    %15 = arith.cmpi slt, %7, %14 : vector<24x128xi32>
    %c1_i32_2 = arith.constant 1 : i32
    %16 = vector.broadcast %c1_i32_2 : i32 to vector<24x128xi32>
    %17 = arith.cmpi sge, %7, %16 : vector<24x128xi32>
    %c14_i32 = arith.constant 14 : i32
    %18 = vector.broadcast %c14_i32 : i32 to vector<24x128xi32>
    %19 = arith.cmpi sle, %7, %18 : vector<24x128xi32>
    %20 = arith.andi %17, %19 : vector<24x128xi1>
    %21 = arith.ori %15, %20 : vector<24x128xi1>
    %c18_i32 = arith.constant 18 : i32
    %22 = vector.broadcast %c18_i32 : i32 to vector<24x128xi32>
    %23 = arith.cmpi sge, %7, %22 : vector<24x128xi32>
    %c31_i32 = arith.constant 31 : i32
    %24 = vector.broadcast %c31_i32 : i32 to vector<24x128xi32>
    %25 = arith.cmpi sle, %7, %24 : vector<24x128xi32>
    %26 = arith.andi %23, %25 : vector<24x128xi1>
    %27 = arith.ori %21, %26 : vector<24x128xi1>
    %c35_i32 = arith.constant 35 : i32
    %28 = vector.broadcast %c35_i32 : i32 to vector<24x128xi32>
    %29 = arith.cmpi sge, %7, %28 : vector<24x128xi32>
    %c48_i32 = arith.constant 48 : i32
    %30 = vector.broadcast %c48_i32 : i32 to vector<24x128xi32>
    %31 = arith.cmpi sle, %7, %30 : vector<24x128xi32>
    %32 = arith.andi %29, %31 : vector<24x128xi1>
    %33 = arith.ori %27, %32 : vector<24x128xi1>
    %c1_i32_3 = arith.constant 1 : i32
    %34 = vector.broadcast %c1_i32_3 : i32 to vector<24x128xi32>
    %35 = arith.cmpi sge, %6, %34 : vector<24x128xi32>
    %c14_i32_4 = arith.constant 14 : i32
    %36 = vector.broadcast %c14_i32_4 : i32 to vector<24x128xi32>
    %37 = arith.cmpi sle, %6, %36 : vector<24x128xi32>
    %38 = arith.andi %35, %37 : vector<24x128xi1>
    %39 = arith.andi %38, %33 : vector<24x128xi1>
    %40 = arith.extui %39 : vector<24x128xi1> to vector<24x128xi32>
    %41 = arith.sitofp %40 : vector<24x128xi32> to vector<24x128xf32>
    %c1_i32_5 = arith.constant 1 : i32
    %42 = tpu.dynamic_rotate %5 by %c1_i32_5 dim 1 : vector<24x128xf32>, i32 -> vector<24x128xf32>
    %43 = arith.addf %5, %42 : vector<24x128xf32>
    %c127_i32 = arith.constant 127 : i32
    %44 = tpu.dynamic_rotate %5 by %c127_i32 dim 1 : vector<24x128xf32>, i32 -> vector<24x128xf32>
    %45 = arith.addf %43, %44 : vector<24x128xf32>
    %c1_i32_6 = arith.constant 1 : i32
    %46 = tpu.dynamic_rotate %45 by %c1_i32_6 dim 0 : vector<24x128xf32>, i32 -> vector<24x128xf32>
    %47 = arith.addf %45, %46 : vector<24x128xf32>
    %c23_i32 = arith.constant 23 : i32
    %48 = tpu.dynamic_rotate %45 by %c23_i32 dim 0 : vector<24x128xf32>, i32 -> vector<24x128xf32>
    %49 = arith.addf %47, %48 : vector<24x128xf32>
    %50 = arith.mulf %49, %41 : vector<24x128xf32>
    %51 = tpu.iota {dimensions = array<i32: 0>} : vector<128x16xi32>
    %52 = tpu.iota {dimensions = array<i32: 1>} : vector<128x16xi32>
    %c0_i32_7 = arith.constant 0 : i32
    %53 = vector.broadcast %c0_i32_7 : i32 to vector<128x16xi32>
    %54 = arith.cmpi slt, %51, %53 : vector<128x16xi32>
    %c0_i32_8 = arith.constant 0 : i32
    %55 = vector.broadcast %c0_i32_8 : i32 to vector<128x16xi32>
    %56 = arith.addi %55, %52 : vector<128x16xi32>
    %57 = arith.cmpi eq, %51, %56 : vector<128x16xi32>
    %58 = arith.ori %54, %57 : vector<128x16xi1>
    %c17_i32 = arith.constant 17 : i32
    %59 = vector.broadcast %c17_i32 : i32 to vector<128x16xi32>
    %60 = arith.addi %59, %52 : vector<128x16xi32>
    %61 = arith.cmpi eq, %51, %60 : vector<128x16xi32>
    %62 = arith.ori %58, %61 : vector<128x16xi1>
    %c34_i32 = arith.constant 34 : i32
    %63 = vector.broadcast %c34_i32 : i32 to vector<128x16xi32>
    %64 = arith.addi %63, %52 : vector<128x16xi32>
    %65 = arith.cmpi eq, %51, %64 : vector<128x16xi32>
    %66 = arith.ori %62, %65 : vector<128x16xi1>
    %67 = arith.extui %66 : vector<128x16xi1> to vector<128x16xi32>
    %68 = arith.sitofp %67 : vector<128x16xi32> to vector<128x16xf32>
    %69 = arith.truncf %68 : vector<128x16xf32> to vector<128x16xbf16>
    %70 = arith.truncf %50 : vector<24x128xf32> to vector<24x128xbf16>
    %cst_9 = arith.constant 0.000000e+00 : f32
    %71 = vector.broadcast %cst_9 : f32 to vector<24x128xf32>
    %72 = arith.cmpf ogt, %50, %71 : vector<24x128xf32>
    %73 = arith.extui %72 : vector<24x128xi1> to vector<24x128xi32>
    %74 = arith.sitofp %73 : vector<24x128xi32> to vector<24x128xf32>
    %75 = arith.truncf %74 : vector<24x128xf32> to vector<24x128xbf16>
    %cst_10 = arith.constant dense<0.000000e+00> : vector<24x16xf32>
    %76 = tpu.matmul %70, %69, %cst_10 {dimension_numbers = #tpu.dot_dimension_numbers<[1], [0], [0], [1], [0, 0, 1, 1], [], []>} : vector<24x128xbf16>, vector<128x16xbf16>, vector<24x16xf32> -> vector<24x16xf32>
    %cst_11 = arith.constant dense<0.000000e+00> : vector<24x16xf32>
    %77 = tpu.matmul %75, %69, %cst_11 {dimension_numbers = #tpu.dot_dimension_numbers<[1], [0], [0], [1], [0, 0, 1, 1], [], []>} : vector<24x128xbf16>, vector<128x16xbf16>, vector<24x16xf32> -> vector<24x16xf32>
    %78 = vector.shape_cast %50 : vector<24x128xf32> to vector<1x24x128xf32>
    %cst_12 = arith.constant dense<0.000000e+00> : vector<1xf32>
    %79 = vector.multi_reduction <add>, %78, %cst_12 [1, 2] : vector<1x24x128xf32> to vector<1xf32>
    %80 = vector.shape_cast %79 : vector<1xf32> to vector<1x1x1xf32>
    %81 = vector.extract %80[0, 0, 0] : f32 from vector<1x1x1xf32>
    %82 = arith.mulf %76, %77 : vector<24x16xf32>
    %83 = vector.shape_cast %82 : vector<24x16xf32> to vector<1x24x16xf32>
    %cst_13 = arith.constant dense<0.000000e+00> : vector<1xf32>
    %84 = vector.multi_reduction <add>, %83, %cst_13 [1, 2] : vector<1x24x16xf32> to vector<1xf32>
    %85 = vector.shape_cast %84 : vector<1xf32> to vector<1x1x1xf32>
    %86 = vector.extract %85[0, 0, 0] : f32 from vector<1x1x1xf32>
    %87 = arith.subf %81, %86 : f32
    %88 = arith.mulf %13, %5 : vector<24x128xf32>
    %cst_14 = arith.constant 1.000000e+00 : f32
    %c0_i32_15 = arith.constant 0 : i32
    %89:3 = scf.while (%arg3 = %88, %arg4 = %cst_14, %arg5 = %c0_i32_15) : (vector<24x128xf32>, f32, i32) -> (vector<24x128xf32>, f32, i32) {
      %cst_28 = arith.constant 0.000000e+00 : f32
      %129 = arith.cmpf ogt, %arg4, %cst_28 : f32
      %c32_i32 = arith.constant 32 : i32
      %130 = arith.cmpi slt, %arg5, %c32_i32 : i32
      %131 = arith.andi %129, %130 : i1
      scf.condition(%131) %arg3, %arg4, %arg5 : vector<24x128xf32>, f32, i32
    } do {
    ^bb0(%arg3: vector<24x128xf32>, %arg4: f32, %arg5: i32):
      %c1_i32_28 = arith.constant 1 : i32
      %129 = tpu.dynamic_rotate %arg3 by %c1_i32_28 dim 0 : vector<24x128xf32>, i32 -> vector<24x128xf32>
      %c23_i32_29 = arith.constant 23 : i32
      %130 = tpu.dynamic_rotate %arg3 by %c23_i32_29 dim 0 : vector<24x128xf32>, i32 -> vector<24x128xf32>
      %131 = arith.maximumf %129, %130 : vector<24x128xf32>
      %132 = arith.maximumf %arg3, %131 : vector<24x128xf32>
      %133 = arith.mulf %132, %5 : vector<24x128xf32>
      %c1_i32_30 = arith.constant 1 : i32
      %134 = tpu.dynamic_rotate %133 by %c1_i32_30 dim 1 : vector<24x128xf32>, i32 -> vector<24x128xf32>
      %c127_i32_31 = arith.constant 127 : i32
      %135 = tpu.dynamic_rotate %133 by %c127_i32_31 dim 1 : vector<24x128xf32>, i32 -> vector<24x128xf32>
      %136 = arith.maximumf %134, %135 : vector<24x128xf32>
      %137 = arith.maximumf %133, %136 : vector<24x128xf32>
      %138 = arith.mulf %137, %5 : vector<24x128xf32>
      %c1_i32_32 = arith.constant 1 : i32
      %139 = tpu.dynamic_rotate %138 by %c1_i32_32 dim 0 : vector<24x128xf32>, i32 -> vector<24x128xf32>
      %c23_i32_33 = arith.constant 23 : i32
      %140 = tpu.dynamic_rotate %138 by %c23_i32_33 dim 0 : vector<24x128xf32>, i32 -> vector<24x128xf32>
      %141 = arith.maximumf %139, %140 : vector<24x128xf32>
      %142 = arith.maximumf %138, %141 : vector<24x128xf32>
      %143 = arith.mulf %142, %5 : vector<24x128xf32>
      %c1_i32_34 = arith.constant 1 : i32
      %144 = tpu.dynamic_rotate %143 by %c1_i32_34 dim 1 : vector<24x128xf32>, i32 -> vector<24x128xf32>
      %c127_i32_35 = arith.constant 127 : i32
      %145 = tpu.dynamic_rotate %143 by %c127_i32_35 dim 1 : vector<24x128xf32>, i32 -> vector<24x128xf32>
      %146 = arith.maximumf %144, %145 : vector<24x128xf32>
      %147 = arith.maximumf %143, %146 : vector<24x128xf32>
      %148 = arith.mulf %147, %5 : vector<24x128xf32>
      %c1_i32_36 = arith.constant 1 : i32
      %149 = tpu.dynamic_rotate %148 by %c1_i32_36 dim 0 : vector<24x128xf32>, i32 -> vector<24x128xf32>
      %c23_i32_37 = arith.constant 23 : i32
      %150 = tpu.dynamic_rotate %148 by %c23_i32_37 dim 0 : vector<24x128xf32>, i32 -> vector<24x128xf32>
      %151 = arith.maximumf %149, %150 : vector<24x128xf32>
      %152 = arith.maximumf %148, %151 : vector<24x128xf32>
      %153 = arith.mulf %152, %5 : vector<24x128xf32>
      %c1_i32_38 = arith.constant 1 : i32
      %154 = tpu.dynamic_rotate %153 by %c1_i32_38 dim 1 : vector<24x128xf32>, i32 -> vector<24x128xf32>
      %c127_i32_39 = arith.constant 127 : i32
      %155 = tpu.dynamic_rotate %153 by %c127_i32_39 dim 1 : vector<24x128xf32>, i32 -> vector<24x128xf32>
      %156 = arith.maximumf %154, %155 : vector<24x128xf32>
      %157 = arith.maximumf %153, %156 : vector<24x128xf32>
      %158 = arith.mulf %157, %5 : vector<24x128xf32>
      %c1_i32_40 = arith.constant 1 : i32
      %159 = tpu.dynamic_rotate %158 by %c1_i32_40 dim 0 : vector<24x128xf32>, i32 -> vector<24x128xf32>
      %c23_i32_41 = arith.constant 23 : i32
      %160 = tpu.dynamic_rotate %158 by %c23_i32_41 dim 0 : vector<24x128xf32>, i32 -> vector<24x128xf32>
      %161 = arith.maximumf %159, %160 : vector<24x128xf32>
      %162 = arith.maximumf %158, %161 : vector<24x128xf32>
      %163 = arith.mulf %162, %5 : vector<24x128xf32>
      %c1_i32_42 = arith.constant 1 : i32
      %164 = tpu.dynamic_rotate %163 by %c1_i32_42 dim 1 : vector<24x128xf32>, i32 -> vector<24x128xf32>
      %c127_i32_43 = arith.constant 127 : i32
      %165 = tpu.dynamic_rotate %163 by %c127_i32_43 dim 1 : vector<24x128xf32>, i32 -> vector<24x128xf32>
      %166 = arith.maximumf %164, %165 : vector<24x128xf32>
      %167 = arith.maximumf %163, %166 : vector<24x128xf32>
      %168 = arith.mulf %167, %5 : vector<24x128xf32>
      %c1_i32_44 = arith.constant 1 : i32
      %169 = tpu.dynamic_rotate %168 by %c1_i32_44 dim 0 : vector<24x128xf32>, i32 -> vector<24x128xf32>
      %c23_i32_45 = arith.constant 23 : i32
      %170 = tpu.dynamic_rotate %168 by %c23_i32_45 dim 0 : vector<24x128xf32>, i32 -> vector<24x128xf32>
      %171 = arith.maximumf %169, %170 : vector<24x128xf32>
      %172 = arith.maximumf %168, %171 : vector<24x128xf32>
      %173 = arith.mulf %172, %5 : vector<24x128xf32>
      %c1_i32_46 = arith.constant 1 : i32
      %174 = tpu.dynamic_rotate %173 by %c1_i32_46 dim 1 : vector<24x128xf32>, i32 -> vector<24x128xf32>
      %c127_i32_47 = arith.constant 127 : i32
      %175 = tpu.dynamic_rotate %173 by %c127_i32_47 dim 1 : vector<24x128xf32>, i32 -> vector<24x128xf32>
      %176 = arith.maximumf %174, %175 : vector<24x128xf32>
      %177 = arith.maximumf %173, %176 : vector<24x128xf32>
      %178 = arith.mulf %177, %5 : vector<24x128xf32>
      %c1_i32_48 = arith.constant 1 : i32
      %179 = tpu.dynamic_rotate %178 by %c1_i32_48 dim 0 : vector<24x128xf32>, i32 -> vector<24x128xf32>
      %c23_i32_49 = arith.constant 23 : i32
      %180 = tpu.dynamic_rotate %178 by %c23_i32_49 dim 0 : vector<24x128xf32>, i32 -> vector<24x128xf32>
      %181 = arith.maximumf %179, %180 : vector<24x128xf32>
      %182 = arith.maximumf %178, %181 : vector<24x128xf32>
      %183 = arith.mulf %182, %5 : vector<24x128xf32>
      %c1_i32_50 = arith.constant 1 : i32
      %184 = tpu.dynamic_rotate %183 by %c1_i32_50 dim 1 : vector<24x128xf32>, i32 -> vector<24x128xf32>
      %c127_i32_51 = arith.constant 127 : i32
      %185 = tpu.dynamic_rotate %183 by %c127_i32_51 dim 1 : vector<24x128xf32>, i32 -> vector<24x128xf32>
      %186 = arith.maximumf %184, %185 : vector<24x128xf32>
      %187 = arith.maximumf %183, %186 : vector<24x128xf32>
      %188 = arith.mulf %187, %5 : vector<24x128xf32>
      %c1_i32_52 = arith.constant 1 : i32
      %189 = tpu.dynamic_rotate %188 by %c1_i32_52 dim 0 : vector<24x128xf32>, i32 -> vector<24x128xf32>
      %c23_i32_53 = arith.constant 23 : i32
      %190 = tpu.dynamic_rotate %188 by %c23_i32_53 dim 0 : vector<24x128xf32>, i32 -> vector<24x128xf32>
      %191 = arith.maximumf %189, %190 : vector<24x128xf32>
      %192 = arith.maximumf %188, %191 : vector<24x128xf32>
      %193 = arith.mulf %192, %5 : vector<24x128xf32>
      %c1_i32_54 = arith.constant 1 : i32
      %194 = tpu.dynamic_rotate %193 by %c1_i32_54 dim 1 : vector<24x128xf32>, i32 -> vector<24x128xf32>
      %c127_i32_55 = arith.constant 127 : i32
      %195 = tpu.dynamic_rotate %193 by %c127_i32_55 dim 1 : vector<24x128xf32>, i32 -> vector<24x128xf32>
      %196 = arith.maximumf %194, %195 : vector<24x128xf32>
      %197 = arith.maximumf %193, %196 : vector<24x128xf32>
      %198 = arith.mulf %197, %5 : vector<24x128xf32>
      %c1_i32_56 = arith.constant 1 : i32
      %199 = tpu.dynamic_rotate %198 by %c1_i32_56 dim 0 : vector<24x128xf32>, i32 -> vector<24x128xf32>
      %c23_i32_57 = arith.constant 23 : i32
      %200 = tpu.dynamic_rotate %198 by %c23_i32_57 dim 0 : vector<24x128xf32>, i32 -> vector<24x128xf32>
      %201 = arith.maximumf %199, %200 : vector<24x128xf32>
      %202 = arith.maximumf %198, %201 : vector<24x128xf32>
      %203 = arith.mulf %202, %5 : vector<24x128xf32>
      %c1_i32_58 = arith.constant 1 : i32
      %204 = tpu.dynamic_rotate %203 by %c1_i32_58 dim 1 : vector<24x128xf32>, i32 -> vector<24x128xf32>
      %c127_i32_59 = arith.constant 127 : i32
      %205 = tpu.dynamic_rotate %203 by %c127_i32_59 dim 1 : vector<24x128xf32>, i32 -> vector<24x128xf32>
      %206 = arith.maximumf %204, %205 : vector<24x128xf32>
      %207 = arith.maximumf %203, %206 : vector<24x128xf32>
      %208 = arith.mulf %207, %5 : vector<24x128xf32>
      %209 = arith.subf %208, %arg3 : vector<24x128xf32>
      %210 = vector.shape_cast %209 : vector<24x128xf32> to vector<1x24x128xf32>
      %cst_60 = arith.constant dense<0xFF800000> : vector<1xf32>
      %211 = vector.multi_reduction <maximumf>, %210, %cst_60 [1, 2] : vector<1x24x128xf32> to vector<1xf32>
      %212 = vector.shape_cast %211 : vector<1xf32> to vector<1x1x1xf32>
      %213 = vector.extract %212[0, 0, 0] : f32 from vector<1x1x1xf32>
      %c1_i32_61 = arith.constant 1 : i32
      %214 = arith.addi %arg5, %c1_i32_61 : i32
      scf.yield %208, %213, %214 : vector<24x128xf32>, f32, i32
    }
    %90 = arith.cmpf oeq, %89#0, %13 : vector<24x128xf32>
    %91 = arith.extui %90 : vector<24x128xi1> to vector<24x128xi32>
    %92 = arith.sitofp %91 : vector<24x128xi32> to vector<24x128xf32>
    %93 = arith.truncf %92 : vector<24x128xf32> to vector<24x128xbf16>
    %94 = tpu.iota {dimensions = array<i32: 0>} : vector<128x3xi32>
    %95 = tpu.iota {dimensions = array<i32: 1>} : vector<128x3xi32>
    %c17_i32_16 = arith.constant 17 : i32
    %96 = vector.broadcast %c17_i32_16 : i32 to vector<128x3xi32>
    %97 = arith.muli %95, %96 : vector<128x3xi32>
    %98 = arith.cmpi sge, %94, %97 : vector<128x3xi32>
    %c17_i32_17 = arith.constant 17 : i32
    %99 = vector.broadcast %c17_i32_17 : i32 to vector<128x3xi32>
    %100 = arith.muli %95, %99 : vector<128x3xi32>
    %c16_i32 = arith.constant 16 : i32
    %101 = vector.broadcast %c16_i32 : i32 to vector<128x3xi32>
    %102 = arith.addi %100, %101 : vector<128x3xi32>
    %103 = arith.cmpi slt, %94, %102 : vector<128x3xi32>
    %104 = arith.andi %98, %103 : vector<128x3xi1>
    %105 = arith.extui %104 : vector<128x3xi1> to vector<128x3xi32>
    %106 = arith.sitofp %105 : vector<128x3xi32> to vector<128x3xf32>
    %107 = arith.truncf %106 : vector<128x3xf32> to vector<128x3xbf16>
    %cst_18 = arith.constant dense<0.000000e+00> : vector<24x3xf32>
    %108 = tpu.matmul %93, %107, %cst_18 {dimension_numbers = #tpu.dot_dimension_numbers<[1], [0], [0], [1], [0, 0, 1, 1], [], []>} : vector<24x128xbf16>, vector<128x3xbf16>, vector<24x3xf32> -> vector<24x3xf32>
    %cst_19 = arith.constant dense<0.000000e+00> : vector<3xf32>
    %109 = vector.multi_reduction <add>, %108, %cst_19 [0] : vector<24x3xf32> to vector<3xf32>
    %110 = vector.shape_cast %109 : vector<3xf32> to vector<1x3xf32>
    %cst_20 = arith.constant 1.000000e+00 : f32
    %111 = vector.broadcast %cst_20 : f32 to vector<1x3xf32>
    %112 = arith.cmpf ogt, %110, %111 : vector<1x3xf32>
    %cst_21 = arith.constant 1.000000e+00 : f32
    %cst_22 = arith.constant 0.000000e+00 : f32
    %113 = vector.broadcast %cst_21 : f32 to vector<1x3xf32>
    %114 = vector.broadcast %cst_22 : f32 to vector<1x3xf32>
    %115 = arith.select %112, %113, %114 : vector<1x3xi1>, vector<1x3xf32>
    %116 = vector.shape_cast %115 : vector<1x3xf32> to vector<1x1x3xf32>
    %cst_23 = arith.constant dense<0.000000e+00> : vector<1xf32>
    %117 = vector.multi_reduction <add>, %116, %cst_23 [1, 2] : vector<1x1x3xf32> to vector<1xf32>
    %118 = vector.shape_cast %117 : vector<1xf32> to vector<1x1x1xf32>
    %119 = vector.extract %118[0, 0, 0] : f32 from vector<1x1x1xf32>
    %120 = tpu.iota {dimensions = array<i32: 0>} : vector<2x128xi32>
    %c0_i32_24 = arith.constant 0 : i32
    %121 = vector.broadcast %c0_i32_24 : i32 to vector<2x128xi32>
    %122 = arith.cmpi eq, %120, %121 : vector<2x128xi32>
    %123 = vector.broadcast %119 : f32 to vector<2x128xf32>
    %124 = vector.broadcast %87 : f32 to vector<2x128xf32>
    %125 = arith.select %122, %123, %124 : vector<2x128xi1>, vector<2x128xf32>
    %c0_25 = arith.constant 0 : index
    %c0_26 = arith.constant 0 : index
    %c0_27 = arith.constant 0 : index
    %126 = vector.load %arg2[%c0_25, %c0_26, %c0_27] : memref<1x2x128xf32, #tpu.memory_space<vmem>>, vector<1x2x128xf32>
    %127 = vector.shape_cast %126 : vector<1x2x128xf32> to vector<2x128xf32>
    %128 = vector.shape_cast %125 : vector<2x128xf32> to vector<1x2x128xf32>
    tpu.vector_store %arg2[%c0_25, %c0_26, %c0_27], %128 {strides = array<i32>} : memref<1x2x128xf32, #tpu.memory_space<vmem>>, vector<1x2x128xf32>,
    return
  }
  func.func @transform_0(%arg0: i32) -> (i32, i32, i32) {
    %c0_i32 = arith.constant 0 : i32
    %c0_i32_0 = arith.constant 0 : i32
    %c0_i32_1 = arith.constant 0 : i32
    return %arg0, %c0_i32, %c0_i32_0 : i32, i32, i32
  }
  func.func @transform_1(%arg0: i32) -> (i32, i32, i32) {
    %c0_i32 = arith.constant 0 : i32
    %c0_i32_0 = arith.constant 0 : i32
    %c0_i32_1 = arith.constant 0 : i32
    return %arg0, %c0_i32, %c0_i32_0 : i32, i32, i32
  }
}

</mosaic_0001>

<llo_original>
// kernel: tpu_custom_call.1
$region0: #{tpu_custom_call.1}
  #allocation0 [shape = 'u32[]', space=smem, size = 0x4, offset = 0x4, fixed_abs, tag = 'smem constant byte address 0x4 - core index']
  #allocation1 [shape = 'u32[72,128]{1,0:T(1,128)}', space=vmem, size = 0x9000, scoped, tag = 'internal scratch']
  %s0 = inlined_call_operand.hbm [shape: f32[2,24,128], index: 0, kind: input, shape index: {}]
  %s1 = inlined_call_operand.hbm [shape: f32[2,2,128], index: 1, kind: output, shape index: {}]
  %s2 = sld [smem:[#allocation0]]
  $region48: #{tpu_custom_call.1} parent=0
    _
  %s4 = ssub.s32 1, %s2
  %s5 = scalar_select 0, %s4, %s2
  $region1: #{tpu_custom_call.1} parent=0
    #allocation2 [shape = 'u8[24576]{0}', space=vmem, size = 0x6000, scoped, tag = 'input window, operand 0']
    #allocation3 [shape = 's32[2]{0}', space=sflag, size = 0x8, scoped, tag = 'scoped memory for tpu_custom_call.1']
    #allocation4 [shape = 's32[2]{0}', space=sflag, size = 0x8, scoped, tag = 'scoped memory for tpu_custom_call.1']
    #allocation5 [shape = 'u8[2048]{0}', space=vmem, size = 0x800, scoped, tag = 'output window, operand 0']
    %6 = vsyncpa [#allocation3], 0
    %s7 = scalar_lea.sflag [#allocation3], 1
    %8 = vsyncpa %s7, 0
    %9 = vsyncpa [#allocation4], 0
    %s10 = scalar_lea.sflag [#allocation4], 1
    %11 = vsyncpa %s10, 0
    loop: start=0, step=1, limit=4
    $region2: #{tpu_custom_call.1} parent=1 // loop_pre_header
      _
    $region3: #{tpu_custom_call.1} parent=1 // loop_header
      %s13 = sphi 0, %s17
      %p14 = scmp.ge.s32.totalorder %s13, 4
      %s23 = sphi 0, %s25
      %s26 = sphi 0, %s23
      %s27 = sphi 0, %s26
      %s43 = sphi 0, %s27
      %s49 = sphi 0, %s51
      %s52 = sphi 0, %s49
      %s53 = sphi 0, %s52
      %s69 = sphi 0, %s53
    $region4: #{tpu_custom_call.1} parent=1 // loop_header_branch
      %16 = sbr.rel (%p14) target = $region8
    $region5: #{tpu_custom_call.1} parent=1 // loop_body
      %s18 = ssub.s32 %s13, 1
      %s19 = ssub.s32 %s13, 2
      %s20 = sadd.s32 %s13, 1
      %s21 = ssub.s32 %s13, %s20
      %p22 = scmp.eq.s32.totalorder %s21, 0
      %s24 = sadd.s32 %s23, 1
      %s25 = scalar_select %p22, %s23, %s24
      %p28 = pneg %p22
      %p29 = scmp.eq.s32.totalorder %s13, 1
      %p30 = por %p28, %p29
      %p31 = scmp.ne.s32.totalorder %s23, %s26
      %p32 = scmp.eq.s32.totalorder %s13, 0
      %p33 = por %p31, %p32
      %p34 = scmp.ne.s32.totalorder %s23, %s26
      %p35 = scmp.eq.s32.totalorder %s18, 1
      %p36 = por %p34, %p35
      %p37 = scmp.ne.s32.totalorder %s26, %s27
      %p38 = scmp.eq.s32.totalorder %s18, 0
      %p39 = por %p37, %p38
      %p40 = scmp.ne.s32.totalorder %s26, %s27
      %p41 = scmp.eq.s32.totalorder %s19, 1
      %p42 = por %p40, %p41
      %p44 = scmp.ne.s32.totalorder %s27, %s43
      %p45 = scmp.eq.s32.totalorder %s19, 0
      %p46 = por %p44, %p45
      %s47 = ssub.s32 %s13, %s20
      %p48 = scmp.eq.s32.totalorder %s47, 0
      %s50 = sadd.s32 %s49, 1
      %s51 = scalar_select %p48, %s49, %s50
      %p54 = pneg %p48
      %p55 = scmp.eq.s32.totalorder %s13, 1
      %p56 = por %p54, %p55
      %p57 = scmp.ne.s32.totalorder %s49, %s52
      %p58 = scmp.eq.s32.totalorder %s13, 0
      %p59 = por %p57, %p58
      %p60 = scmp.ne.s32.totalorder %s49, %s52
      %p61 = scmp.eq.s32.totalorder %s18, 1
      %p62 = por %p60, %p61
      %p63 = scmp.ne.s32.totalorder %s52, %s53
      %p64 = scmp.eq.s32.totalorder %s18, 0
      %p65 = por %p63, %p64
      %p66 = scmp.ne.s32.totalorder %s52, %s53
      %p67 = scmp.eq.s32.totalorder %s19, 1
      %p68 = por %p66, %p67
      %p70 = scmp.ne.s32.totalorder %s53, %s69
      %p71 = scmp.eq.s32.totalorder %s19, 0
      %p72 = por %p70, %p71
      %p73 = scmp.le.s32.totalorder 1, %s13
      %p74 = scmp.lt.s32.totalorder %s13, 3
      %p75 = pnand %p73, %p74
      %p76 = pneg %p75
      // Predicated region
      $region9: #{tpu_custom_call.1} parent=5 // pred_check
        _
      $region10: #{tpu_custom_call.1} parent=5 // pred_check_branch
        %78 = sbr.rel (%p75) target = $region12
      $region11: #{tpu_custom_call.1} parent=5 // pred_region
        %s79 = ssub.s32 %s13, 1
      $region12: #{tpu_custom_call.1} parent=5 // pred_fallthru
        _
      %p80 = scmp.lt.s32.totalorder %s13, 2
      // Predicated region
      $region13: #{tpu_custom_call.1} parent=5 // pred_check
        %p81 = pneg %p80
      $region14: #{tpu_custom_call.1} parent=5 // pred_check_branch
        %83 = sbr.rel (%p81) target = $region16
      $region15: #{tpu_custom_call.1} parent=5 // pred_region
        // Predicated region
        $region17: #{tpu_custom_call.1} parent=15 // pred_check
          %p84 = pneg %p33
        $region18: #{tpu_custom_call.1} parent=15 // pred_check_branch
          %86 = sbr.rel (%p84) target = $region20
        $region19: #{tpu_custom_call.1} parent=15 // pred_region
          %s87 = sand.u32 %s23, 1
          %s88 = scalar_lea.sflag [#allocation3], %s87
          %s89 = sand.u32 %s23, 1
          %s90 = smul.addr %s89, 24
          %s91 = scalar_lea.vmem [#allocation2], %s90
          %93 = vsyncadd %s88, 0
          %s94 = smul.addr %s13, 3
          %s95 = smul.addr %s94, 8
          %s96 = scalar_lea.hbm %s0, %s95
          %s97 = sshll.u32 %s96, 4
          %s98 = int_to_ptr.hbm [resolvable:$true] %s97
          %s99 = sshll.u32 %s91, 4
          %s100 = int_to_ptr.vmem [resolvable:$true] %s99
          %105 = dma.hbm_to_vmem [thread:$0]  %s98, 384, %s100, %s88, 128, 128, 8
        $region20: #{tpu_custom_call.1} parent=15 // pred_fallthru
          _
      $region16: #{tpu_custom_call.1} parent=5 // pred_fallthru
        _
      %p106 = scmp.le.s32.totalorder 1, %s13
      %p107 = scmp.lt.s32.totalorder %s13, 3
      %p108 = pnand %p106, %p107
      %p109 = pneg %p108
      // Predicated region
      $region21: #{tpu_custom_call.1} parent=5 // pred_check
        _
      $region22: #{tpu_custom_call.1} parent=5 // pred_check_branch
        %111 = sbr.rel (%p108) target = $region24
      $region23: #{tpu_custom_call.1} parent=5 // pred_region
        %s112 = ssub.s32 %s13, 1
        %s113 = sand.u32 %s26, 1
        %s114 = scalar_lea.sflag [#allocation3], %s113
        %s115 = sand.u32 %s26, 1
        %s116 = smul.addr %s115, 24
        %s117 = scalar_lea.vmem [#allocation2], %s116
        // Predicated region
        $region25: #{tpu_custom_call.1} parent=23 // pred_check
          %p118 = pneg %p39
        $region26: #{tpu_custom_call.1} parent=23 // pred_check_branch
          %120 = sbr.rel (%p118) target = $region28
        $region27: #{tpu_custom_call.1} parent=23 // pred_region
          %122 = dma.done %s114, 384
        $region28: #{tpu_custom_call.1} parent=23 // pred_fallthru
          _
        %s123 = sand.u32 %s26, 1
        %s124 = scalar_lea.sflag [#allocation3], %s123
        %s125 = sand.u32 %s26, 1
        %s126 = smul.addr %s125, 24
        %s127 = scalar_lea.vmem [#allocation2], %s126
        %p128 = pneg %p39
        %p129 = pneg %p36
        %p130 = pneg %p65
        %p131 = pneg %p62
        %s132 = sand.u32 %s52, 1
        %s133 = scalar_lea.sflag [#allocation4], %s132
        %s134 = sand.u32 %s52, 1
        %s135 = smul.addr %s134, 2
        %s136 = scalar_lea.vmem [#allocation5], %s135
        %v137 = vld [vmem:[%s117] sm:$0xff]
        %v138 = vld [vmem:[%s117 + $0x8] sm:$0xff]
        %v139 = vld [vmem:[%s117 + $0x10] sm:$0xff]
        %vm140 = vcmp.gt.f32.partialorder %v137, 0.0
        %vm141 = vcmp.gt.f32.partialorder %v138, 0.0
        %vm142 = vcmp.gt.f32.partialorder %v139, 0.0
        %v143 = vsel %vm140, 1, 0
        %v144 = vsel %vm141, 1, 0
        %v145 = vsel %vm142, 1, 0
        %v146 = vcvt.s32.f32 %v143
        %v147 = vcvt.s32.f32 %v144
        %v148 = vcvt.s32.f32 %v145
        %v149 = vlaneseq
        %v150 = vshrl.u32 %v149, 7
        %v151 = vadd.s32 %v150, 8
        %v152 = vadd.s32 %v150, 16
        %v153 = vlaneseq
        %v154 = vand.u32 %v153, 127
        %v155 = vmul.u32 %v150, 128
        %v156 = vmul.u32 %v151, 128
        %v157 = vmul.u32 %v152, 128
        %v158 = vadd.s32 %v155, %v154
        %v159 = vadd.s32 %v156, %v154
        %v160 = vadd.s32 %v157, %v154
        %v161 = vadd.s32 %v158, 1
        %v162 = vadd.s32 %v159, 1
        %v163 = vadd.s32 %v160, 1
        %v164 = vcvt.s32.f32 %v161
        %v165 = vcvt.s32.f32 %v162
        %v166 = vcvt.s32.f32 %v163
        %vm167 = vcmp.lt.s32.totalorder %v154, 0
        %vm168 = vcmp.ge.s32.totalorder %v154, 1
        %vm169 = vcmp.le.s32.totalorder %v154, 14
        %vm170 = vmand %vm168, %vm169
        %vm171 = vmor %vm167, %vm170
        %vm172 = vcmp.ge.s32.totalorder %v154, 18
        %vm173 = vcmp.le.s32.totalorder %v154, 31
        %vm174 = vmand %vm172, %vm173
        %vm175 = vmor %vm171, %vm174
        %vm176 = vcmp.ge.s32.totalorder %v154, 35
        %vm177 = vcmp.le.s32.totalorder %v154, 48
        %vm178 = vmand %vm176, %vm177
        %vm179 = vmor %vm175, %vm178
        %vm180 = vcmp.ge.s32.totalorder %v150, 1
        %vm181 = vcmp.ge.s32.totalorder %v151, 1
        %vm182 = vcmp.ge.s32.totalorder %v152, 1
        %vm183 = vcmp.le.s32.totalorder %v150, 14
        %vm184 = vcmp.le.s32.totalorder %v151, 14
        %vm185 = vcmp.le.s32.totalorder %v152, 14
        %vm186 = vmand %vm180, %vm183
        %vm187 = vmand %vm181, %vm184
        %vm188 = vmand %vm182, %vm185
        %vm189 = vmand %vm186, %vm179
        %vm190 = vmand %vm187, %vm179
        %vm191 = vmand %vm188, %vm179
        %v192 = vsel %vm189, 1, 0
        %v193 = vsel %vm190, 1, 0
        %v194 = vsel %vm191, 1, 0
        %v195 = vcvt.s32.f32 %v192
        %v196 = vcvt.s32.f32 %v193
        %v197 = vcvt.s32.f32 %v194
        %198 = vrot.lane.b32.xlu0 %v146, 1
        %v199 = vpop.permute.xlu0 %198
        %200 = vrot.lane.b32.xlu0 %v147, 1
        %v201 = vpop.permute.xlu0 %200
        %202 = vrot.lane.b32.xlu0 %v148, 1
        %v203 = vpop.permute.xlu0 %202
        %v204 = vadd.f32 %v146, %v199
        %v205 = vadd.f32 %v147, %v201
        %v206 = vadd.f32 %v148, %v203
        %207 = vrot.lane.b32.xlu0 %v146, 127
        %v208 = vpop.permute.xlu0 %207
        %209 = vrot.lane.b32.xlu0 %v147, 127
        %v210 = vpop.permute.xlu0 %209
        %211 = vrot.lane.b32.xlu0 %v148, 127
        %v212 = vpop.permute.xlu0 %211
        %v213 = vadd.f32 %v204, %v208
        %v214 = vadd.f32 %v205, %v210
        %v215 = vadd.f32 %v206, %v212
        %v216 = vrot.slane %v213, 7
        %v217 = vrot.slane %v214, 7
        %v218 = vrot.slane %v215, 7
        %vm219 = vcmp.lt.s32.totalorder %v150, 1
        %v220 = vsel %vm219, %v217, %v218
        %v221 = vsel %vm219, %v216, %v217
        %v222 = vsel %vm219, %v218, %v216
        %v223 = vadd.f32 %v213, %v222
        %v224 = vadd.f32 %v214, %v221
        %v225 = vadd.f32 %v215, %v220
        %v226 = vrot.slane %v213, 1
        %v227 = vrot.slane %v214, 1
        %v228 = vrot.slane %v215, 1
        %vm229 = vcmp.lt.s32.totalorder %v150, 7
        %v230 = vsel %vm229, %v227, %v228
        %v231 = vsel %vm229, %v226, %v227
        %v232 = vsel %vm229, %v228, %v226
        %v233 = vadd.f32 %v223, %v231
        %v234 = vadd.f32 %v224, %v230
        %v235 = vadd.f32 %v225, %v232
        %v236 = vmul.f32 %v233, %v195
        %v237 = vmul.f32 %v234, %v196
        %v238 = vmul.f32 %v235, %v197
        %v239 = vadd.s32 %v150, 24
        %v240 = vadd.s32 %v150, 32
        %v241 = vadd.s32 %v150, 40
        %v242 = vadd.s32 %v150, 48
        %v243 = vadd.s32 %v150, 56
        %v244 = vadd.s32 %v150, 64
        %v245 = vadd.s32 %v150, 72
        %v246 = vadd.s32 %v150, 80
        %v247 = vadd.s32 %v150, 88
        %v248 = vadd.s32 %v150, 96
        %v249 = vadd.s32 %v150, 104
        %v250 = vadd.s32 %v150, 112
        %v251 = vadd.s32 %v150, 120
        %vm252 = vcmp.lt.s32.totalorder %v150, 0
        %vm253 = vcmp.lt.s32.totalorder %v151, 0
        %vm254 = vcmp.lt.s32.totalorder %v152, 0
        %vm255 = vcmp.lt.s32.totalorder %v239, 0
        %vm256 = vcmp.lt.s32.totalorder %v240, 0
        %vm257 = vcmp.lt.s32.totalorder %v241, 0
        %vm258 = vcmp.lt.s32.totalorder %v242, 0
        %vm259 = vcmp.lt.s32.totalorder %v243, 0
        %vm260 = vcmp.lt.s32.totalorder %v244, 0
        %vm261 = vcmp.lt.s32.totalorder %v245, 0
        %vm262 = vcmp.lt.s32.totalorder %v246, 0
        %vm263 = vcmp.lt.s32.totalorder %v247, 0
        %vm264 = vcmp.lt.s32.totalorder %v248, 0
        %vm265 = vcmp.lt.s32.totalorder %v249, 0
        %vm266 = vcmp.lt.s32.totalorder %v250, 0
        %vm267 = vcmp.lt.s32.totalorder %v251, 0
        %vm268 = vcmp.eq.s32.totalorder %v150, %v154
        %vm269 = vcmp.eq.s32.totalorder %v151, %v154
        %vm270 = vcmp.eq.s32.totalorder %v152, %v154
        %vm271 = vcmp.eq.s32.totalorder %v239, %v154
        %vm272 = vcmp.eq.s32.totalorder %v240, %v154
        %vm273 = vcmp.eq.s32.totalorder %v241, %v154
        %vm274 = vcmp.eq.s32.totalorder %v242, %v154
        %vm275 = vcmp.eq.s32.totalorder %v243, %v154
        %vm276 = vcmp.eq.s32.totalorder %v244, %v154
        %vm277 = vcmp.eq.s32.totalorder %v245, %v154
        %vm278 = vcmp.eq.s32.totalorder %v246, %v154
        %vm279 = vcmp.eq.s32.totalorder %v247, %v154
        %vm280 = vcmp.eq.s32.totalorder %v248, %v154
        %vm281 = vcmp.eq.s32.totalorder %v249, %v154
        %vm282 = vcmp.eq.s32.totalorder %v250, %v154
        %vm283 = vcmp.eq.s32.totalorder %v251, %v154
        %vm284 = vmor %vm252, %vm268
        %vm285 = vmor %vm253, %vm269
        %vm286 = vmor %vm254, %vm270
        %vm287 = vmor %vm255, %vm271
        %vm288 = vmor %vm256, %vm272
        %vm289 = vmor %vm257, %vm273
        %vm290 = vmor %vm258, %vm274
        %vm291 = vmor %vm259, %vm275
        %vm292 = vmor %vm260, %vm276
        %vm293 = vmor %vm261, %vm277
        %vm294 = vmor %vm262, %vm278
        %vm295 = vmor %vm263, %vm279
        %vm296 = vmor %vm264, %vm280
        %vm297 = vmor %vm265, %vm281
        %vm298 = vmor %vm266, %vm282
        %vm299 = vmor %vm267, %vm283
        %v300 = vadd.s32 %v154, 17
        %vm301 = vcmp.eq.s32.totalorder %v150, %v300
        %vm302 = vcmp.eq.s32.totalorder %v151, %v300
        %vm303 = vcmp.eq.s32.totalorder %v152, %v300
        %vm304 = vcmp.eq.s32.totalorder %v239, %v300
        %vm305 = vcmp.eq.s32.totalorder %v240, %v300
        %vm306 = vcmp.eq.s32.totalorder %v241, %v300
        %vm307 = vcmp.eq.s32.totalorder %v242, %v300
        %vm308 = vcmp.eq.s32.totalorder %v243, %v300
        %vm309 = vcmp.eq.s32.totalorder %v244, %v300
        %vm310 = vcmp.eq.s32.totalorder %v245, %v300
        %vm311 = vcmp.eq.s32.totalorder %v246, %v300
        %vm312 = vcmp.eq.s32.totalorder %v247, %v300
        %vm313 = vcmp.eq.s32.totalorder %v248, %v300
        %vm314 = vcmp.eq.s32.totalorder %v249, %v300
        %vm315 = vcmp.eq.s32.totalorder %v250, %v300
        %vm316 = vcmp.eq.s32.totalorder %v251, %v300
        %vm317 = vmor %vm284, %vm301
        %vm318 = vmor %vm285, %vm302
        %vm319 = vmor %vm286, %vm303
        %vm320 = vmor %vm287, %vm304
        %vm321 = vmor %vm288, %vm305
        %vm322 = vmor %vm289, %vm306
        %vm323 = vmor %vm290, %vm307
        %vm324 = vmor %vm291, %vm308
        %vm325 = vmor %vm292, %vm309
        %vm326 = vmor %vm293, %vm310
        %vm327 = vmor %vm294, %vm311
        %vm328 = vmor %vm295, %vm312
        %vm329 = vmor %vm296, %vm313
        %vm330 = vmor %vm297, %vm314
        %vm331 = vmor %vm298, %vm315
        %vm332 = vmor %vm299, %vm316
        %v333 = vadd.s32 %v154, 34
        %vm334 = vcmp.eq.s32.totalorder %v150, %v333
        %vm335 = vcmp.eq.s32.totalorder %v151, %v333
        %vm336 = vcmp.eq.s32.totalorder %v152, %v333
        %vm337 = vcmp.eq.s32.totalorder %v239, %v333
        %vm338 = vcmp.eq.s32.totalorder %v240, %v333
        %vm339 = vcmp.eq.s32.totalorder %v241, %v333
        %vm340 = vcmp.eq.s32.totalorder %v242, %v333
        %vm341 = vcmp.eq.s32.totalorder %v243, %v333
        %vm342 = vcmp.eq.s32.totalorder %v244, %v333
        %vm343 = vcmp.eq.s32.totalorder %v245, %v333
        %vm344 = vcmp.eq.s32.totalorder %v246, %v333
        %vm345 = vcmp.eq.s32.totalorder %v247, %v333
        %vm346 = vcmp.eq.s32.totalorder %v248, %v333
        %vm347 = vcmp.eq.s32.totalorder %v249, %v333
        %vm348 = vcmp.eq.s32.totalorder %v250, %v333
        %vm349 = vcmp.eq.s32.totalorder %v251, %v333
        %vm350 = vmor %vm317, %vm334
        %vm351 = vmor %vm318, %vm335
        %vm352 = vmor %vm319, %vm336
        %vm353 = vmor %vm320, %vm337
        %vm354 = vmor %vm321, %vm338
        %vm355 = vmor %vm322, %vm339
        %vm356 = vmor %vm323, %vm340
        %vm357 = vmor %vm324, %vm341
        %vm358 = vmor %vm325, %vm342
        %vm359 = vmor %vm326, %vm343
        %vm360 = vmor %vm327, %vm344
        %vm361 = vmor %vm328, %vm345
        %vm362 = vmor %vm329, %vm346
        %vm363 = vmor %vm330, %vm347
        %vm364 = vmor %vm331, %vm348
        %vm365 = vmor %vm332, %vm349
        %v366 = vsel %vm350, 1, 0
        %v367 = vsel %vm351, 1, 0
        %v368 = vsel %vm352, 1, 0
        %v369 = vsel %vm353, 1, 0
        %v370 = vsel %vm354, 1, 0
        %v371 = vsel %vm355, 1, 0
        %v372 = vsel %vm356, 1, 0
        %v373 = vsel %vm357, 1, 0
        %v374 = vsel %vm358, 1, 0
        %v375 = vsel %vm359, 1, 0
        %v376 = vsel %vm360, 1, 0
        %v377 = vsel %vm361, 1, 0
        %v378 = vsel %vm362, 1, 0
        %v379 = vsel %vm363, 1, 0
        %v380 = vsel %vm364, 1, 0
        %v381 = vsel %vm365, 1, 0
        %v382 = vcvt.s32.f32 %v366
        %v383 = vcvt.s32.f32 %v367
        %v384 = vcvt.s32.f32 %v368
        %v385 = vcvt.s32.f32 %v369
        %v386 = vcvt.s32.f32 %v370
        %v387 = vcvt.s32.f32 %v371
        %v388 = vcvt.s32.f32 %v372
        %v389 = vcvt.s32.f32 %v373
        %v390 = vcvt.s32.f32 %v374
        %v391 = vcvt.s32.f32 %v375
        %v392 = vcvt.s32.f32 %v376
        %v393 = vcvt.s32.f32 %v377
        %v394 = vcvt.s32.f32 %v378
        %v395 = vcvt.s32.f32 %v379
        %v396 = vcvt.s32.f32 %v380
        %v397 = vcvt.s32.f32 %v381
        %v398 = vpack.c.bf16 %v383, %v382
        %v399 = vpack.c.bf16 %v385, %v384
        %v400 = vpack.c.bf16 %v387, %v386
        %v401 = vpack.c.bf16 %v389, %v388
        %v402 = vpack.c.bf16 %v391, %v390
        %v403 = vpack.c.bf16 %v393, %v392
        %v404 = vpack.c.bf16 %v395, %v394
        %v405 = vpack.c.bf16 %v397, %v396
        %v406 = vpack.c.bf16 %v237, %v236
        %v407 = vpack.c.bf16 %v238, %v238
        %vm408 = vcmp.gt.f32.partialorder %v236, 0.0
        %vm409 = vcmp.gt.f32.partialorder %v237, 0.0
        %vm410 = vcmp.gt.f32.partialorder %v238, 0.0
        %v411 = vsel %vm408, 1, 0
        %v412 = vsel %vm409, 1, 0
        %v413 = vsel %vm410, 1, 0
        %v414 = vcvt.s32.f32 %v411
        %v415 = vcvt.s32.f32 %v412
        %v416 = vcvt.s32.f32 %v413
        %v417 = vpack.c.bf16 %v415, %v414
        %v418 = vpack.c.bf16 %v416, %v416
        %419 = vmatpush.bf16.msra.mxu0 %v405
        %420 = vmatpush.bf16.msra.mxu0 %v404
        %421 = vmatpush.bf16.msra.mxu0 %v403
        %422 = vmatpush.bf16.msra.mxu0 %v402
        %423 = vmatpush.bf16.msra.mxu0 %v401
        %424 = vmatpush.bf16.msra.mxu0 %v400
        %425 = vmatpush.bf16.msra.mxu0 %v399
        %426 = vmatpush.bf16.msra.mxu0 %v398
        %427 = vmatmul.bf16.gmra.mxu0 %v406
        %v428 = vpop.f32.mrf.mxu0
        %v429 = vadd.f32 0.0, %v428
        %v430 = vpop.f32.mrf.mxu0
        %v431 = vadd.f32 0.0, %v430
        %432 = vmatmul.bf16.gmra.mxu0 %v407
        %v433 = vpop.f32.mrf.mxu0
        %v434 = vadd.f32 0.0, %v433
        %v435 = vpop.f32.mrf.mxu0
        %436 = vdwg.mxu0
        %437 = vmatpush.bf16.msra.mxu0 %v405
        %438 = vmatpush.bf16.msra.mxu0 %v404
        %439 = vmatpush.bf16.msra.mxu0 %v403
        %440 = vmatpush.bf16.msra.mxu0 %v402
        %441 = vmatpush.bf16.msra.mxu0 %v401
        %442 = vmatpush.bf16.msra.mxu0 %v400
        %443 = vmatpush.bf16.msra.mxu0 %v399
        %444 = vmatpush.bf16.msra.mxu0 %v398
        %445 = vmatmul.bf16.gmra.mxu0 %v417
        %v446 = vpop.f32.mrf.mxu0
        %v447 = vadd.f32 0.0, %v446
        %v448 = vpop.f32.mrf.mxu0
        %v449 = vadd.f32 0.0, %v448
        %450 = vmatmul.bf16.gmra.mxu0 %v418
        %v451 = vpop.f32.mrf.mxu0
        %v452 = vadd.f32 0.0, %v451
        %v453 = vpop.f32.mrf.mxu0
        %454 = vdwg.mxu0
        %v455 = vadd.f32 %v236, %v237
        %v456 = vadd.f32 %v455, %v238
        %457 = vadd.xlane.f32.xlu0 %v456
        %v458 = vpop.xlane.xlu0 %457
        %v459 = vrot.slane %v458, 4
        %v460 = vadd.f32 %v458, %v459
        %v461 = vrot.slane %v460, 2
        %v462 = vadd.f32 %v460, %v461
        %v463 = vrot.slane %v462, 1
        %v464 = vadd.f32 %v462, %v463
        %s465 = vtos %v464
        %v466 = vmul.f32 %v429, %v447
        %v467 = vmul.f32 %v431, %v449
        %v468 = vmul.f32 %v434, %v452
        %vm469 = vcmask 130048
        %v470 = vsel %vm469, %v466, 0.0
        %v471 = vsel %vm469, %v467, 0.0
        %v472 = vadd.f32 %v470, %v471
        %v473 = vsel %vm469, %v468, 0.0
        %v474 = vadd.f32 %v472, %v473
        %475 = vadd.xlane.f32.xlu0 %v474
        %v476 = vpop.xlane.xlu0 %475
        %v477 = vrot.slane %v476, 4
        %v478 = vadd.f32 %v476, %v477
        %v479 = vrot.slane %v478, 2
        %v480 = vadd.f32 %v478, %v479
        %v481 = vrot.slane %v480, 1
        %v482 = vadd.f32 %v480, %v481
        %s483 = vtos %v482
        %s484 = ssub.f32 %s465, %s483
        %v485 = vmul.f32 %v164, %v146
        %v486 = vmul.f32 %v165, %v147
        %v487 = vmul.f32 %v166, %v148
        // While loop
        $region29: #{tpu_custom_call.1} parent=23 // loop_pre_header
          _
        $region30: #{tpu_custom_call.1} parent=23 // loop_header
          %v489 = vphi %v485, %v833
          %v490 = vphi %v486, %v834
          %v491 = vphi %v487, %v835
          %s492 = sphi 1.0, %s849
          %s493 = sphi 0, %s850
          %p494 = scmp.gt.f32.partialorder %s492, 0.0
          %p495 = scmp.lt.s32.totalorder %s493, 32
          %p496 = pnand %p494, %p495
          %p497 = pneg %p496
        $region31: #{tpu_custom_call.1} parent=23 // loop_header_branch
          %499 = sbr.rel (%p496) target = $region35
        $region32: #{tpu_custom_call.1} parent=23 // loop_body
          %v500 = vrot.slane %v489, 7
          %v501 = vrot.slane %v490, 7
          %v502 = vrot.slane %v491, 7
          %v503 = vsel %vm219, %v501, %v502
          %v504 = vsel %vm219, %v500, %v501
          %v505 = vsel %vm219, %v502, %v500
          %v506 = vrot.slane %v489, 1
          %v507 = vrot.slane %v490, 1
          %v508 = vrot.slane %v491, 1
          %v509 = vsel %vm229, %v507, %v508
          %v510 = vsel %vm229, %v506, %v507
          %v511 = vsel %vm229, %v508, %v506
          %v512 = vmax.f32 %v505, %v510
          %v513 = vmax.f32 %v504, %v509
          %v514 = vmax.f32 %v503, %v511
          %v515 = vmax.f32 %v489, %v512
          %v516 = vmax.f32 %v490, %v513
          %v517 = vmax.f32 %v491, %v514
          %v518 = vmul.f32 %v515, %v146
          %v519 = vmul.f32 %v516, %v147
          %v520 = vmul.f32 %v517, %v148
          %521 = vrot.lane.b32.xlu0 %v518, 1
          %v522 = vpop.permute.xlu0 %521
          %523 = vrot.lane.b32.xlu0 %v519, 1
          %v524 = vpop.permute.xlu0 %523
          %525 = vrot.lane.b32.xlu0 %v520, 1
          %v526 = vpop.permute.xlu0 %525
          %527 = vrot.lane.b32.xlu0 %v518, 127
          %v528 = vpop.permute.xlu0 %527
          %529 = vrot.lane.b32.xlu0 %v519, 127
          %v530 = vpop.permute.xlu0 %529
          %531 = vrot.lane.b32.xlu0 %v520, 127
          %v532 = vpop.permute.xlu0 %531
          %v533 = vmax.f32 %v522, %v528
          %v534 = vmax.f32 %v524, %v530
          %v535 = vmax.f32 %v526, %v532
          %v536 = vmax.f32 %v518, %v533
          %v537 = vmax.f32 %v519, %v534
          %v538 = vmax.f32 %v520, %v535
          %v539 = vmul.f32 %v536, %v146
          %v540 = vmul.f32 %v537, %v147
          %v541 = vmul.f32 %v538, %v148
          %v542 = vrot.slane %v539, 7
          %v543 = vrot.slane %v540, 7
          %v544 = vrot.slane %v541, 7
          %v545 = vsel %vm219, %v543, %v544
          %v546 = vsel %vm219, %v542, %v543
          %v547 = vsel %vm219, %v544, %v542
          %v548 = vrot.slane %v539, 1
          %v549 = vrot.slane %v540, 1
          %v550 = vrot.slane %v541, 1
          %v551 = vsel %vm229, %v549, %v550
          %v552 = vsel %vm229, %v548, %v549
          %v553 = vsel %vm229, %v550, %v548
          %v554 = vmax.f32 %v547, %v552
          %v555 = vmax.f32 %v546, %v551
          %v556 = vmax.f32 %v545, %v553
          %v557 = vmax.f32 %v539, %v554
          %v558 = vmax.f32 %v540, %v555
          %v559 = vmax.f32 %v541, %v556
          %v560 = vmul.f32 %v557, %v146
          %v561 = vmul.f32 %v558, %v147
          %v562 = vmul.f32 %v559, %v148
          %563 = vrot.lane.b32.xlu0 %v560, 1
          %v564 = vpop.permute.xlu0 %563
          %565 = vrot.lane.b32.xlu0 %v561, 1
          %v566 = vpop.permute.xlu0 %565
          %567 = vrot.lane.b32.xlu0 %v562, 1
          %v568 = vpop.permute.xlu0 %567
          %569 = vrot.lane.b32.xlu0 %v560, 127
          %v570 = vpop.permute.xlu0 %569
          %571 = vrot.lane.b32.xlu0 %v561, 127
          %v572 = vpop.permute.xlu0 %571
          %573 = vrot.lane.b32.xlu0 %v562, 127
          %v574 = vpop.permute.xlu0 %573
          %v575 = vmax.f32 %v564, %v570
          %v576 = vmax.f32 %v566, %v572
          %v577 = vmax.f32 %v568, %v574
          %v578 = vmax.f32 %v560, %v575
          %v579 = vmax.f32 %v561, %v576
          %v580 = vmax.f32 %v562, %v577
          %v581 = vmul.f32 %v578, %v146
          %v582 = vmul.f32 %v579, %v147
          %v583 = vmul.f32 %v580, %v148
          %v584 = vrot.slane %v581, 7
          %v585 = vrot.slane %v582, 7
          %v586 = vrot.slane %v583, 7
          %v587 = vsel %vm219, %v585, %v586
          %v588 = vsel %vm219, %v584, %v585
          %v589 = vsel %vm219, %v586, %v584
          %v590 = vrot.slane %v581, 1
          %v591 = vrot.slane %v582, 1
          %v592 = vrot.slane %v583, 1
          %v593 = vsel %vm229, %v591, %v592
          %v594 = vsel %vm229, %v590, %v591
          %v595 = vsel %vm229, %v592, %v590
          %v596 = vmax.f32 %v589, %v594
          %v597 = vmax.f32 %v588, %v593
          %v598 = vmax.f32 %v587, %v595
          %v599 = vmax.f32 %v581, %v596
          %v600 = vmax.f32 %v582, %v597
          %v601 = vmax.f32 %v583, %v598
          %v602 = vmul.f32 %v599, %v146
          %v603 = vmul.f32 %v600, %v147
          %v604 = vmul.f32 %v601, %v148
          %605 = vrot.lane.b32.xlu0 %v602, 1
          %v606 = vpop.permute.xlu0 %605
          %607 = vrot.lane.b32.xlu0 %v603, 1
          %v608 = vpop.permute.xlu0 %607
          %609 = vrot.lane.b32.xlu0 %v604, 1
          %v610 = vpop.permute.xlu0 %609
          %611 = vrot.lane.b32.xlu0 %v602, 127
          %v612 = vpop.permute.xlu0 %611
          %613 = vrot.lane.b32.xlu0 %v603, 127
          %v614 = vpop.permute.xlu0 %613
          %615 = vrot.lane.b32.xlu0 %v604, 127
          %v616 = vpop.permute.xlu0 %615
          %v617 = vmax.f32 %v606, %v612
          %v618 = vmax.f32 %v608, %v614
          %v619 = vmax.f32 %v610, %v616
          %v620 = vmax.f32 %v602, %v617
          %v621 = vmax.f32 %v603, %v618
          %v622 = vmax.f32 %v604, %v619
          %v623 = vmul.f32 %v620, %v146
          %v624 = vmul.f32 %v621, %v147
          %v625 = vmul.f32 %v622, %v148
          %v626 = vrot.slane %v623, 7
          %v627 = vrot.slane %v624, 7
          %v628 = vrot.slane %v625, 7
          %v629 = vsel %vm219, %v627, %v628
          %v630 = vsel %vm219, %v626, %v627
          %v631 = vsel %vm219, %v628, %v626
          %v632 = vrot.slane %v623, 1
          %v633 = vrot.slane %v624, 1
          %v634 = vrot.slane %v625, 1
          %v635 = vsel %vm229, %v633, %v634
          %v636 = vsel %vm229, %v632, %v633
          %v637 = vsel %vm229, %v634, %v632
          %v638 = vmax.f32 %v631, %v636
          %v639 = vmax.f32 %v630, %v635
          %v640 = vmax.f32 %v629, %v637
          %v641 = vmax.f32 %v623, %v638
          %v642 = vmax.f32 %v624, %v639
          %v643 = vmax.f32 %v625, %v640
          %v644 = vmul.f32 %v641, %v146
          %v645 = vmul.f32 %v642, %v147
          %v646 = vmul.f32 %v643, %v148
          %647 = vrot.lane.b32.xlu0 %v644, 1
          %v648 = vpop.permute.xlu0 %647
          %649 = vrot.lane.b32.xlu0 %v645, 1
          %v650 = vpop.permute.xlu0 %649
          %651 = vrot.lane.b32.xlu0 %v646, 1
          %v652 = vpop.permute.xlu0 %651
          %653 = vrot.lane.b32.xlu0 %v644, 127
          %v654 = vpop.permute.xlu0 %653
          %655 = vrot.lane.b32.xlu0 %v645, 127
          %v656 = vpop.permute.xlu0 %655
          %657 = vrot.lane.b32.xlu0 %v646, 127
          %v658 = vpop.permute.xlu0 %657
          %v659 = vmax.f32 %v648, %v654
          %v660 = vmax.f32 %v650, %v656
          %v661 = vmax.f32 %v652, %v658
          %v662 = vmax.f32 %v644, %v659
          %v663 = vmax.f32 %v645, %v660
          %v664 = vmax.f32 %v646, %v661
          %v665 = vmul.f32 %v662, %v146
          %v666 = vmul.f32 %v663, %v147
          %v667 = vmul.f32 %v664, %v148
          %v668 = vrot.slane %v665, 7
          %v669 = vrot.slane %v666, 7
          %v670 = vrot.slane %v667, 7
          %v671 = vsel %vm219, %v669, %v670
          %v672 = vsel %vm219, %v668, %v669
          %v673 = vsel %vm219, %v670, %v668
          %v674 = vrot.slane %v665, 1
          %v675 = vrot.slane %v666, 1
          %v676 = vrot.slane %v667, 1
          %v677 = vsel %vm229, %v675, %v676
          %v678 = vsel %vm229, %v674, %v675
          %v679 = vsel %vm229, %v676, %v674
          %v680 = vmax.f32 %v673, %v678
          %v681 = vmax.f32 %v672, %v677
          %v682 = vmax.f32 %v671, %v679
          %v683 = vmax.f32 %v665, %v680
          %v684 = vmax.f32 %v666, %v681
          %v685 = vmax.f32 %v667, %v682
          %v686 = vmul.f32 %v683, %v146
          %v687 = vmul.f32 %v684, %v147
          %v688 = vmul.f32 %v685, %v148
          %689 = vrot.lane.b32.xlu0 %v686, 1
          %v690 = vpop.permute.xlu0 %689
          %691 = vrot.lane.b32.xlu0 %v687, 1
          %v692 = vpop.permute.xlu0 %691
          %693 = vrot.lane.b32.xlu0 %v688, 1
          %v694 = vpop.permute.xlu0 %693
          %695 = vrot.lane.b32.xlu0 %v686, 127
          %v696 = vpop.permute.xlu0 %695
          %697 = vrot.lane.b32.xlu0 %v687, 127
          %v698 = vpop.permute.xlu0 %697
          %699 = vrot.lane.b32.xlu0 %v688, 127
          %v700 = vpop.permute.xlu0 %699
          %v701 = vmax.f32 %v690, %v696
          %v702 = vmax.f32 %v692, %v698
          %v703 = vmax.f32 %v694, %v700
          %v704 = vmax.f32 %v686, %v701
          %v705 = vmax.f32 %v687, %v702
          %v706 = vmax.f32 %v688, %v703
          %v707 = vmul.f32 %v704, %v146
          %v708 = vmul.f32 %v705, %v147
          %v709 = vmul.f32 %v706, %v148
          %v710 = vrot.slane %v707, 7
          %v711 = vrot.slane %v708, 7
          %v712 = vrot.slane %v709, 7
          %v713 = vsel %vm219, %v711, %v712
          %v714 = vsel %vm219, %v710, %v711
          %v715 = vsel %vm219, %v712, %v710
          %v716 = vrot.slane %v707, 1
          %v717 = vrot.slane %v708, 1
          %v718 = vrot.slane %v709, 1
          %v719 = vsel %vm229, %v717, %v718
          %v720 = vsel %vm229, %v716, %v717
          %v721 = vsel %vm229, %v718, %v716
          %v722 = vmax.f32 %v715, %v720
          %v723 = vmax.f32 %v714, %v719
          %v724 = vmax.f32 %v713, %v721
          %v725 = vmax.f32 %v707, %v722
          %v726 = vmax.f32 %v708, %v723
          %v727 = vmax.f32 %v709, %v724
          %v728 = vmul.f32 %v725, %v146
          %v729 = vmul.f32 %v726, %v147
          %v730 = vmul.f32 %v727, %v148
          %731 = vrot.lane.b32.xlu0 %v728, 1
          %v732 = vpop.permute.xlu0 %731
          %733 = vrot.lane.b32.xlu0 %v729, 1
          %v734 = vpop.permute.xlu0 %733
          %735 = vrot.lane.b32.xlu0 %v730, 1
          %v736 = vpop.permute.xlu0 %735
          %737 = vrot.lane.b32.xlu0 %v728, 127
          %v738 = vpop.permute.xlu0 %737
          %739 = vrot.lane.b32.xlu0 %v729, 127
          %v740 = vpop.permute.xlu0 %739
          %741 = vrot.lane.b32.xlu0 %v730, 127
          %v742 = vpop.permute.xlu0 %741
          %v743 = vmax.f32 %v732, %v738
          %v744 = vmax.f32 %v734, %v740
          %v745 = vmax.f32 %v736, %v742
          %v746 = vmax.f32 %v728, %v743
          %v747 = vmax.f32 %v729, %v744
          %v748 = vmax.f32 %v730, %v745
          %v749 = vmul.f32 %v746, %v146
          %v750 = vmul.f32 %v747, %v147
          %v751 = vmul.f32 %v748, %v148
          %v752 = vrot.slane %v749, 7
          %v753 = vrot.slane %v750, 7
          %v754 = vrot.slane %v751, 7
          %v755 = vsel %vm219, %v753, %v754
          %v756 = vsel %vm219, %v752, %v753
          %v757 = vsel %vm219, %v754, %v752
          %v758 = vrot.slane %v749, 1
          %v759 = vrot.slane %v750, 1
          %v760 = vrot.slane %v751, 1
          %v761 = vsel %vm229, %v759, %v760
          %v762 = vsel %vm229, %v758, %v759
          %v763 = vsel %vm229, %v760, %v758
          %v764 = vmax.f32 %v757, %v762
          %v765 = vmax.f32 %v756, %v761
          %v766 = vmax.f32 %v755, %v763
          %v767 = vmax.f32 %v749, %v764
          %v768 = vmax.f32 %v750, %v765
          %v769 = vmax.f32 %v751, %v766
          %v770 = vmul.f32 %v767, %v146
          %v771 = vmul.f32 %v768, %v147
          %v772 = vmul.f32 %v769, %v148
          %773 = vrot.lane.b32.xlu0 %v770, 1
          %v774 = vpop.permute.xlu0 %773
          %775 = vrot.lane.b32.xlu0 %v771, 1
          %v776 = vpop.permute.xlu0 %775
          %777 = vrot.lane.b32.xlu0 %v772, 1
          %v778 = vpop.permute.xlu0 %777
          %779 = vrot.lane.b32.xlu0 %v770, 127
          %v780 = vpop.permute.xlu0 %779
          %781 = vrot.lane.b32.xlu0 %v771, 127
          %v782 = vpop.permute.xlu0 %781
          %783 = vrot.lane.b32.xlu0 %v772, 127
          %v784 = vpop.permute.xlu0 %783
          %v785 = vmax.f32 %v774, %v780
          %v786 = vmax.f32 %v776, %v782
          %v787 = vmax.f32 %v778, %v784
          %v788 = vmax.f32 %v770, %v785
          %v789 = vmax.f32 %v771, %v786
          %v790 = vmax.f32 %v772, %v787
          %v791 = vmul.f32 %v788, %v146
          %v792 = vmul.f32 %v789, %v147
          %v793 = vmul.f32 %v790, %v148
          %v794 = vrot.slane %v791, 7
          %v795 = vrot.slane %v792, 7
          %v796 = vrot.slane %v793, 7
          %v797 = vsel %vm219, %v795, %v796
          %v798 = vsel %vm219, %v794, %v795
          %v799 = vsel %vm219, %v796, %v794
          %v800 = vrot.slane %v791, 1
          %v801 = vrot.slane %v792, 1
          %v802 = vrot.slane %v793, 1
          %v803 = vsel %vm229, %v801, %v802
          %v804 = vsel %vm229, %v800, %v801
          %v805 = vsel %vm229, %v802, %v800
          %v806 = vmax.f32 %v799, %v804
          %v807 = vmax.f32 %v798, %v803
          %v808 = vmax.f32 %v797, %v805
          %v809 = vmax.f32 %v791, %v806
          %v810 = vmax.f32 %v792, %v807
          %v811 = vmax.f32 %v793, %v808
          %v812 = vmul.f32 %v809, %v146
          %v813 = vmul.f32 %v810, %v147
          %v814 = vmul.f32 %v811, %v148
          %815 = vrot.lane.b32.xlu0 %v812, 1
          %v816 = vpop.permute.xlu0 %815
          %817 = vrot.lane.b32.xlu0 %v813, 1
          %v818 = vpop.permute.xlu0 %817
          %819 = vrot.lane.b32.xlu0 %v814, 1
          %v820 = vpop.permute.xlu0 %819
          %821 = vrot.lane.b32.xlu0 %v812, 127
          %v822 = vpop.permute.xlu0 %821
          %823 = vrot.lane.b32.xlu0 %v813, 127
          %v824 = vpop.permute.xlu0 %823
          %825 = vrot.lane.b32.xlu0 %v814, 127
          %v826 = vpop.permute.xlu0 %825
          %v827 = vmax.f32 %v816, %v822
          %v828 = vmax.f32 %v818, %v824
          %v829 = vmax.f32 %v820, %v826
          %v830 = vmax.f32 %v812, %v827
          %v831 = vmax.f32 %v813, %v828
          %v832 = vmax.f32 %v814, %v829
          %v833 = vmul.f32 %v830, %v146
          %v834 = vmul.f32 %v831, %v147
          %v835 = vmul.f32 %v832, %v148
          %v836 = vsub.f32 %v833, %v489
          %v837 = vsub.f32 %v834, %v490
          %v838 = vsub.f32 %v835, %v491
          %v839 = vmax.f32 %v836, %v837
          %v840 = vmax.f32 %v839, %v838
          %841 = vmax.xlane.f32.xlu0 %v840
          %v842 = vpop.xlane.xlu0 %841
          %v843 = vrot.slane %v842, 4
          %v844 = vmax.f32 %v842, %v843
          %v845 = vrot.slane %v844, 2
          %v846 = vmax.f32 %v844, %v845
          %v847 = vrot.slane %v846, 1
          %v848 = vmax.f32 %v846, %v847
          %s849 = vtos %v848
          %s850 = sadd.s32 %s493, 1
        $region33: #{tpu_custom_call.1} parent=23 // loop_footer
          _
        $region34: #{tpu_custom_call.1} parent=23 // loop_footer_branch
          %488 = sbr.rel target = $region30
        $region35: #{tpu_custom_call.1} parent=23 // loop_exit
          _
        %vm851 = vcmp.eq.f32.partialorder %v489, %v164
        %vm852 = vcmp.eq.f32.partialorder %v490, %v165
        %vm853 = vcmp.eq.f32.partialorder %v491, %v166
        %v854 = vsel %vm851, 1, 0
        %v855 = vsel %vm852, 1, 0
        %v856 = vsel %vm853, 1, 0
        %v857 = vcvt.s32.f32 %v854
        %v858 = vcvt.s32.f32 %v855
        %v859 = vcvt.s32.f32 %v856
        %v860 = vpack.c.bf16 %v858, %v857
        %v861 = vpack.c.bf16 %v859, %v859
        %v862 = vmul.u32 %v154, 17
        %vm863 = vcmp.ge.s32.totalorder %v150, %v862
        %vm864 = vcmp.ge.s32.totalorder %v151, %v862
        %vm865 = vcmp.ge.s32.totalorder %v152, %v862
        %vm866 = vcmp.ge.s32.totalorder %v239, %v862
        %vm867 = vcmp.ge.s32.totalorder %v240, %v862
        %vm868 = vcmp.ge.s32.totalorder %v241, %v862
        %vm869 = vcmp.ge.s32.totalorder %v242, %v862
        %vm870 = vcmp.ge.s32.totalorder %v243, %v862
        %vm871 = vcmp.ge.s32.totalorder %v244, %v862
        %vm872 = vcmp.ge.s32.totalorder %v245, %v862
        %vm873 = vcmp.ge.s32.totalorder %v246, %v862
        %vm874 = vcmp.ge.s32.totalorder %v247, %v862
        %vm875 = vcmp.ge.s32.totalorder %v248, %v862
        %vm876 = vcmp.ge.s32.totalorder %v249, %v862
        %vm877 = vcmp.ge.s32.totalorder %v250, %v862
        %vm878 = vcmp.ge.s32.totalorder %v251, %v862
        %v879 = vadd.s32 %v862, 16
        %vm880 = vcmp.lt.s32.totalorder %v150, %v879
        %vm881 = vcmp.lt.s32.totalorder %v151, %v879
        %vm882 = vcmp.lt.s32.totalorder %v152, %v879
        %vm883 = vcmp.lt.s32.totalorder %v239, %v879
        %vm884 = vcmp.lt.s32.totalorder %v240, %v879
        %vm885 = vcmp.lt.s32.totalorder %v241, %v879
        %vm886 = vcmp.lt.s32.totalorder %v242, %v879
        %vm887 = vcmp.lt.s32.totalorder %v243, %v879
        %vm888 = vcmp.lt.s32.totalorder %v244, %v879
        %vm889 = vcmp.lt.s32.totalorder %v245, %v879
        %vm890 = vcmp.lt.s32.totalorder %v246, %v879
        %vm891 = vcmp.lt.s32.totalorder %v247, %v879
        %vm892 = vcmp.lt.s32.totalorder %v248, %v879
        %vm893 = vcmp.lt.s32.totalorder %v249, %v879
        %vm894 = vcmp.lt.s32.totalorder %v250, %v879
        %vm895 = vcmp.lt.s32.totalorder %v251, %v879
        %vm896 = vmand %vm863, %vm880
        %vm897 = vmand %vm864, %vm881
        %vm898 = vmand %vm865, %vm882
        %vm899 = vmand %vm866, %vm883
        %vm900 = vmand %vm867, %vm884
        %vm901 = vmand %vm868, %vm885
        %vm902 = vmand %vm869, %vm886
        %vm903 = vmand %vm870, %vm887
        %vm904 = vmand %vm871, %vm888
        %vm905 = vmand %vm872, %vm889
        %vm906 = vmand %vm873, %vm890
        %vm907 = vmand %vm874, %vm891
        %vm908 = vmand %vm875, %vm892
        %vm909 = vmand %vm876, %vm893
        %vm910 = vmand %vm877, %vm894
        %vm911 = vmand %vm878, %vm895
        %v912 = vsel %vm896, 1, 0
        %v913 = vsel %vm897, 1, 0
        %v914 = vsel %vm898, 1, 0
        %v915 = vsel %vm899, 1, 0
        %v916 = vsel %vm900, 1, 0
        %v917 = vsel %vm901, 1, 0
        %v918 = vsel %vm902, 1, 0
        %v919 = vsel %vm903, 1, 0
        %v920 = vsel %vm904, 1, 0
        %v921 = vsel %vm905, 1, 0
        %v922 = vsel %vm906, 1, 0
        %v923 = vsel %vm907, 1, 0
        %v924 = vsel %vm908, 1, 0
        %v925 = vsel %vm909, 1, 0
        %v926 = vsel %vm910, 1, 0
        %v927 = vsel %vm911, 1, 0
        %v928 = vcvt.s32.f32 %v912
        %v929 = vcvt.s32.f32 %v913
        %v930 = vcvt.s32.f32 %v914
        %v931 = vcvt.s32.f32 %v915
        %v932 = vcvt.s32.f32 %v916
        %v933 = vcvt.s32.f32 %v917
        %v934 = vcvt.s32.f32 %v918
        %v935 = vcvt.s32.f32 %v919
        %v936 = vcvt.s32.f32 %v920
        %v937 = vcvt.s32.f32 %v921
        %v938 = vcvt.s32.f32 %v922
        %v939 = vcvt.s32.f32 %v923
        %v940 = vcvt.s32.f32 %v924
        %v941 = vcvt.s32.f32 %v925
        %v942 = vcvt.s32.f32 %v926
        %v943 = vcvt.s32.f32 %v927
        %v944 = vpack.c.bf16 %v929, %v928
        %v945 = vpack.c.bf16 %v931, %v930
        %v946 = vpack.c.bf16 %v933, %v932
        %v947 = vpack.c.bf16 %v935, %v934
        %v948 = vpack.c.bf16 %v937, %v936
        %v949 = vpack.c.bf16 %v939, %v938
        %v950 = vpack.c.bf16 %v941, %v940
        %v951 = vpack.c.bf16 %v943, %v942
        %952 = vmatpush.bf16.msra.mxu0 %v951
        %953 = vmatpush.bf16.msra.mxu0 %v950
        %954 = vmatpush.bf16.msra.mxu0 %v949
        %955 = vmatpush.bf16.msra.mxu0 %v948
        %956 = vmatpush.bf16.msra.mxu0 %v947
        %957 = vmatpush.bf16.msra.mxu0 %v946
        %958 = vmatpush.bf16.msra.mxu0 %v945
        %959 = vmatpush.bf16.msra.mxu0 %v944
        %960 = vmatmul.bf16.gmra.mxu0 %v860
        %v961 = vpop.f32.mrf.mxu0
        %v962 = vadd.f32 0.0, %v961
        %v963 = vpop.f32.mrf.mxu0
        %v964 = vadd.f32 0.0, %v963
        %965 = vmatmul.bf16.gmra.mxu0 %v861
        %v966 = vpop.f32.mrf.mxu0
        %v967 = vadd.f32 0.0, %v966
        %v968 = vpop.f32.mrf.mxu0
        %969 = vdwg.mxu0
        %vm970 = vcmask 23552
        %v971 = vsel %vm970, %v962, 0.0
        %v972 = vsel %vm970, %v964, 0.0
        %v973 = vadd.f32 %v971, %v972
        %v974 = vsel %vm970, %v967, 0.0
        %v975 = vadd.f32 %v973, %v974
        %v976 = vrot.slane %v975, 4
        %v977 = vadd.f32 %v975, %v976
        %v978 = vrot.slane %v977, 2
        %v979 = vadd.f32 %v977, %v978
        %v980 = vrot.slane %v979, 1
        %v981 = vadd.f32 %v979, %v980
        %vm982 = vcmp.gt.f32.partialorder %v981, 1.0
        %v983 = vsel %vm982, 1.0, 0.0
        %vm984 = vcmask 16384
        %v985 = vsel %vm984, %v983, 0.0
        %986 = vadd.xlane.f32.xlu0 %v985
        %v987 = vpop.xlane.xlu0 %986
        %v988 = vrot.slane %v987, 4
        %v989 = vadd.f32 %v987, %v988
        %v990 = vrot.slane %v989, 2
        %v991 = vadd.f32 %v989, %v990
        %v992 = vrot.slane %v991, 1
        %v993 = vadd.f32 %v991, %v992
        %s994 = vtos %v993
        %vm995 = vcmp.eq.s32.totalorder %v150, 0
        %v996 = vstv %s994
        %v997 = vstv %s484
        %v998 = vsel %vm995, %v996, %v997
        %999 = vst [vmem:[%s136] sm:$0x3] %v998
        %s1000 = sand.u32 %s52, 1
        %s1001 = scalar_lea.sflag [#allocation4], %s1000
        %s1002 = sand.u32 %s52, 1
        %s1003 = smul.addr %s1002, 2
        %s1004 = scalar_lea.vmem [#allocation5], %s1003
        // Predicated region
        $region36: #{tpu_custom_call.1} parent=23 // pred_check
          %p1005 = pneg %p62
        $region37: #{tpu_custom_call.1} parent=23 // pred_check_branch
          %1007 = sbr.rel (%p1005) target = $region39
        $region38: #{tpu_custom_call.1} parent=23 // pred_region
          %1009 = vsyncadd %s1001, 0
          %s1010 = smul.addr %s18, 2
          %s1011 = scalar_lea.hbm %s1, %s1010
          %s1013 = sshll.u32 %s1004, 4
          %s1014 = int_to_ptr.vmem [resolvable:$true] %s1013
          %s1015 = sshll.u32 %s1011, 4
          %s1016 = int_to_ptr.hbm [resolvable:$true] %s1015
          %1018 = dma.vmem_to_hbm [thread:$0]  %s1014, 32, %s1016, %s1001
        $region39: #{tpu_custom_call.1} parent=23 // pred_fallthru
          _
      $region24: #{tpu_custom_call.1} parent=5 // pred_fallthru
        _
      %p1019 = scmp.le.s32.totalorder 2, %s13
      // Predicated region
      $region40: #{tpu_custom_call.1} parent=5 // pred_check
        %p1020 = pneg %p1019
      $region41: #{tpu_custom_call.1} parent=5 // pred_check_branch
        %1022 = sbr.rel (%p1020) target = $region43
      $region42: #{tpu_custom_call.1} parent=5 // pred_region
        %s1023 = ssub.s32 %s13, 2
        // Predicated region
        $region44: #{tpu_custom_call.1} parent=42 // pred_check
          %p1024 = pneg %p68
        $region45: #{tpu_custom_call.1} parent=42 // pred_check_branch
          %1026 = sbr.rel (%p1024) target = $region47
        $region46: #{tpu_custom_call.1} parent=42 // pred_region
          %s1027 = sand.u32 %s53, 1
          %s1028 = scalar_lea.sflag [#allocation4], %s1027
          %s1029 = sand.u32 %s53, 1
          %s1030 = smul.addr %s1029, 2
          %s1031 = scalar_lea.vmem [#allocation5], %s1030
          %1033 = dma.done %s1028, 32
        $region47: #{tpu_custom_call.1} parent=42 // pred_fallthru
          _
      $region43: #{tpu_custom_call.1} parent=5 // pred_fallthru
        _
    $region6: #{tpu_custom_call.1} parent=1 // loop_footer
      %s17 = sadd.s32 1, %s13
    $region7: #{tpu_custom_call.1} parent=1 // loop_footer_branch
      %12 = sbr.rel target = $region3
    $region8: #{tpu_custom_call.1} parent=1 // loop_exit
      _
    %1034 = vsyncpa [#allocation3], 1
    %s1035 = scalar_lea.sflag [#allocation3], 1
    %1036 = vsyncpa %s1035, 1
    %1037 = vsyncpa [#allocation4], 1
    %s1038 = scalar_lea.sflag [#allocation4], 1
    %1039 = vsyncpa %s1038, 1

</llo_original>
